<compile_context>
chip_gen: v7x
topology: tpu7x:2x2x1
jax: 0.10.0
libtpu: 0.0.40
codegen_flags: <defaults>
</compile_context>

<pallas_src>
import jax
import jax.numpy as jnp
import numpy as np
from jax import lax
from jax.experimental import pallas as pl
from jax.experimental.pallas import tpu as pltpu


def _vmem_capacity_bytes():
    try:
        return int(pltpu.get_tpu_info().vmem_capacity_bytes)
    except Exception:
        return 64 * 1024 * 1024  # conservative: v7x per-TensorCore VMEM


def _pick_slab(hw_pad):
    """Largest slab (<= 2048 lanes, multiple of 128) dividing hw_pad."""
    for t in (2048, 1024, 512, 256, 128):
        if hw_pad % t == 0:
            return t
    return hw_pad


def _pick_hw_tile(hw_pad, c, itemsize, max_block_bytes):
    """Largest lane-tile dividing hw_pad that fits the budget, preferring >=2 tiles."""
    k = hw_pad // 128
    best = 128
    for d in sorted({d for d in range(1, k + 1) if k % d == 0}, reverse=True):
        t = 128 * d
        if c * t * itemsize <= max_block_bytes:
            if hw_pad // t >= 2:
                return t
            best = t
    return best


def _make_main_kernel(nb, c, cr, hw_pad, hw_true, slab, use_mxu_sse):
    n_slabs = hw_pad // slab
    inv_hw = 1.0 / float(hw_true)
    unroll = n_slabs <= 8

    def kernel(x_ref, w1_ref, b1_ref, w2_ref, b2_ref, ws_ref, bs_ref, o_ref):
        # ---- pass 1: slab-chunked pooled sum over HW (intermediates stay slab-sized)
        def pool_body(i, acc):
            off = pl.multiple_of(i * slab, slab)
            xs = x_ref[:, :, pl.ds(off, slab)].astype(jnp.float32)
            return acc + jnp.sum(xs, axis=2)

        pooled = lax.fori_loop(0, n_slabs, pool_body,
                               jnp.zeros((nb, c), jnp.float32),
                               unroll=unroll) * inv_hw              # (nb, C), mean over true HW

        # ---- CSE squeeze MLP: tiny, stays on VPU/XLU (MXU would be >=99% idle)
        w1 = w1_ref[...].astype(jnp.float32)                        # (Cr, C)
        z1 = jnp.sum(pooled[:, None, :] * w1[None, :, :], axis=2)   # (nb, Cr)
        z1 = jnp.maximum(z1 + b1_ref[...].astype(jnp.float32), 0.0)
        w2 = w2_ref[...].astype(jnp.float32)                        # (C, Cr)
        z2 = jnp.sum(z1[:, None, :] * w2[None, :, :], axis=2)       # (nb, C)
        ch_gate = jax.nn.sigmoid(z2 + b2_ref[...].astype(jnp.float32))

        ws_vec = ws_ref[...].astype(jnp.float32)[0]                 # (C,)
        bs = bs_ref[0, 0]

        # ---- pass 2: per-slab SSE gate + fused (ch + sp) * x, lane-dense store
        def apply_body(i, carry):
            off = pl.multiple_of(i * slab, slab)
            xs = x_ref[:, :, pl.ds(off, slab)].astype(jnp.float32)  # (nb, C, slab)
            if use_mxu_sse:
                s = jnp.einsum('ncs,c->ns', xs, ws_vec,
                               preferred_element_type=jnp.float32)
            else:
                s = jnp.sum(xs * ws_vec[None, :, None], axis=1)     # (nb, slab)
            sp_gate = jax.nn.sigmoid(s + bs)
            gate = ch_gate[:, :, None] + sp_gate[:, None, :]        # (nb, C, slab)
            o_ref[:, :, pl.ds(off, slab)] = (xs * gate).astype(o_ref.dtype)
            return carry

        lax.fori_loop(0, n_slabs, apply_body, jnp.int32(0), unroll=unroll)

    return kernel


def _make_apply_kernel(c, use_mxu_sse):
    """Fallback: channel gate precomputed, apply fused gate per (n, hw_tile)."""
    def kernel(x_ref, ch_ref, ws_ref, bs_ref, o_ref):
        x = x_ref[...].astype(jnp.float32)                          # (1, C, hw_t)
        ws_vec = ws_ref[...].astype(jnp.float32)[0]                 # (C,)
        if use_mxu_sse:
            s = jnp.einsum('ncs,c->ns', x, ws_vec,
                           preferred_element_type=jnp.float32)
        else:
            s = jnp.sum(x * ws_vec[None, :, None], axis=1)          # (1, hw_t)
        sp_gate = jax.nn.sigmoid(s + bs_ref[0, 0])
        ch_gate = ch_ref[...].astype(jnp.float32)[:, 0, :]          # (1, C)
        gate = ch_gate[:, :, None] + sp_gate[:, None, :]
        o_ref[...] = (x * gate).astype(o_ref.dtype)
    return kernel


def scse_block(x, params, *, max_block_bytes=None):
    """x: (N, C, H, W) float32 or bfloat16.  params: (w1, b1, w2, b2, ws, bs)
    in the PyTorch layouts (w1:(Cr,C), b1:(Cr,1), w2:(C,Cr), b2:(C,1),
    ws:(1,C), bs:(1,1)), float32."""
    w1, b1, w2, b2, ws, bs = params
    N, C, H, W = x.shape
    HW = H * W
    Cr = w1.shape[0]
    itemsize = jnp.dtype(x.dtype).itemsize

    vmem_cap = _vmem_capacity_bytes()
    if max_block_bytes is None:
        # 128 MiB VMEM parts (v5e/v6e) take bigger blocks; 64 MiB (v7x) stays tight.
        max_block_bytes = (14 << 20) if vmem_cap >= (96 << 20) else (5 << 20)

    # Pad HW up to a lane-dense multiple of 128 (exact: mean divides by true HW,
    # padded columns are zero and sliced off after the call).
    hw_pad = ((HW + 127) // 128) * 128
    x3 = x.reshape(N, C, HW)
    x3_pad = jnp.pad(x3, ((0, 0), (0, 0), (0, hw_pad - HW))) if hw_pad != HW else x3

    # SSE-on-MXU only pays off on small-VMEM / high-bandwidth (v7x-class) parts
    # and only once C is MXU-sized; elsewhere the VPU has ample slack.
    use_mxu_sse = (C >= 128) and (vmem_cap < (96 << 20))

    bytes_per_n = C * hw_pad * itemsize
    flops = 6 * N * C * HW + 4 * N * C * Cr
    transcendentals = N * (C + hw_pad)

    use_fallback = (bytes_per_n > max_block_bytes) or (N == 1)

    if not use_fallback:
        # ---- main path: batch-chunked grid, two in-kernel passes over HW slabs.
        nb = 1
        for d in range(1, N + 1):
            if N % d == 0 and d * bytes_per_n <= max_block_bytes and N // d >= 2:
                nb = d                       # keep grid length >= 2 for pipelining
        grid = (N // nb,)
        slab = _pick_slab(hw_pad)
        block_bytes = nb * bytes_per_n
        vmem_limit = int(min(max(4 * block_bytes + (8 << 20), 16 << 20),
                             vmem_cap - (4 << 20)))

        kernel = _make_main_kernel(nb, C, Cr, hw_pad, HW, slab, use_mxu_sse)
        b1r = b1.reshape(1, Cr)              # lane-major biases: no width-1 masked loads
        b2r = b2.reshape(1, C)

        out = pl.pallas_call(
            kernel,
            out_shape=jax.ShapeDtypeStruct((N, C, hw_pad), x.dtype),
            grid=grid,
            in_specs=[
                pl.BlockSpec((nb, C, hw_pad), lambda i: (i, 0, 0)),   # x chunk
                pl.BlockSpec((Cr, C), lambda i: (0, 0)),              # w1
                pl.BlockSpec((1, Cr), lambda i: (0, 0)),              # b1
                pl.BlockSpec((C, Cr), lambda i: (0, 0)),              # w2
                pl.BlockSpec((1, C), lambda i: (0, 0)),               # b2
                pl.BlockSpec((1, C), lambda i: (0, 0)),               # ws (1x1 conv)
                pl.BlockSpec(memory_space=pltpu.MemorySpace.SMEM),    # bs scalar
            ],
            out_specs=pl.BlockSpec((nb, C, hw_pad), lambda i: (i, 0, 0)),
            compiler_params=pltpu.CompilerParams(
                dimension_semantics=("parallel",),
                vmem_limit_bytes=vmem_limit),
            cost_estimate=pl.CostEstimate(
                flops=flops, transcendentals=transcendentals,
                bytes_accessed=2 * N * C * hw_pad * itemsize),
        )(x3_pad, w1, b1r, w2, b2r, ws, bs)
    else:
        # ---- HW-tiled fallback: pooled mean + tiny MLP as plain XLA (one extra
        #      read of x), then a 2-D-grid Pallas kernel applies the fused gate.
        pooled = jnp.mean(x3, axis=2, dtype=jnp.float32)              # true-HW mean
        z1 = jax.nn.relu(pooled @ w1.T + b1[:, 0])
        ch = jax.nn.sigmoid(z1 @ w2.T + b2[:, 0]).astype(jnp.float32)
        ch3 = ch.reshape(N, 1, C)

        hw_tile = _pick_hw_tile(hw_pad, C, itemsize, max_block_bytes)
        T = hw_pad // hw_tile
        tile_bytes = C * hw_tile * itemsize
        vmem_limit = int(min(max(4 * tile_bytes + (8 << 20), 16 << 20),
                             vmem_cap - (4 << 20)))

        kernel = _make_apply_kernel(C, use_mxu_sse)
        out = pl.pallas_call(
            kernel,
            out_shape=jax.ShapeDtypeStruct((N, C, hw_pad), x.dtype),
            grid=(N, T),
            in_specs=[
                pl.BlockSpec((1, C, hw_tile), lambda n, t: (n, 0, t)),  # x tile
                pl.BlockSpec((1, 1, C), lambda n, t: (n, 0, 0)),        # channel gate
                pl.BlockSpec((1, C), lambda n, t: (0, 0)),              # ws
                pl.BlockSpec(memory_space=pltpu.MemorySpace.SMEM),      # bs scalar
            ],
            out_specs=pl.BlockSpec((1, C, hw_tile), lambda n, t: (n, 0, t)),
            compiler_params=pltpu.CompilerParams(
                dimension_semantics=("parallel", "parallel"),
                vmem_limit_bytes=vmem_limit),
            cost_estimate=pl.CostEstimate(
                flops=flops, transcendentals=transcendentals,
                bytes_accessed=3 * N * C * hw_pad * itemsize),
        )(x3_pad, ch3, ws, bs)

    if hw_pad != HW:
        out = out[:, :, :HW]
    return out.reshape(N, C, H, W)


def scse_reference(x, params):
    """Pure-JAX reference matching PyTorch SCSEBlock forward semantics."""
    w1, b1, w2, b2, ws, bs = params
    pooled = x.mean(axis=(2, 3))                                       # (N, C)
    z1 = jax.nn.relu(pooled @ w1.T + b1[:, 0])                         # (N, Cr)
    z2 = jax.nn.sigmoid(z1 @ w2.T + b2[:, 0])                          # (N, C)
    cse = x * z2[:, :, None, None]
    s = jax.nn.sigmoid(jnp.einsum("nchw,oc->nohw", x, ws) + bs[0, 0])  # (N,1,H,W)
    sse = x * s
    return cse + sse


def make_params(key, in_channels, reduction=2):
    """Deterministic synthetic parameters (shapes as in the PyTorch __init__)."""
    cr = in_channels // reduction
    k1, k2, k3, k4, k5, k6 = jax.random.split(key, 6)
    w1 = jax.random.normal(k1, (cr, in_channels), jnp.float32) * 0.5   # FC1
    b1 = jax.random.normal(k2, (cr, 1), jnp.float32) * 0.1
    w2 = jax.random.normal(k3, (in_channels, cr), jnp.float32) * 0.5   # FC2
    b2 = jax.random.normal(k4, (in_channels, 1), jnp.float32) * 0.1
    ws = jax.random.normal(k5, (1, in_channels), jnp.float32) * 0.5    # SSE 1x1
    bs = jax.random.normal(k6, (1, 1), jnp.float32) * 0.1
    return (w1, b1, w2, b2, ws, bs)


if __name__ == "__main__":
    key = jax.random.PRNGKey(0)
    kx, kp = jax.random.split(key)

    # 1) spec shape, f32, main (batch-chunked) path
    N, C, H, W = 2, 4, 16, 16
    x = jax.random.normal(kx, (N, C, H, W), jnp.float32)
    params = make_params(kp, in_channels=C, reduction=2)
    out = jax.block_until_ready(scse_block(x, params))
    np.testing.assert_allclose(np.asarray(out), np.asarray(scse_reference(x, params)),
                               rtol=1e-5, atol=1e-5)

    # 2) bf16 I/O (halves HBM bytes); gate math stays f32 in-kernel
    xb = x.astype(jnp.bfloat16)
    outb = jax.block_until_ready(scse_block(xb, params))
    assert outb.dtype == jnp.bfloat16
    refb = scse_reference(xb.astype(jnp.float32), params)
    np.testing.assert_allclose(np.asarray(outb.astype(jnp.float32)), np.asarray(refb),
                               rtol=3e-2, atol=3e-2)

    # 3) N=1 and HW not a multiple of 128 -> zero-padded lanes + HW-tiled fallback
    k2, k3 = jax.random.split(kx)
    x1 = jax.random.normal(k2, (1, 8, 7, 7), jnp.float32)
    p1 = make_params(k3, in_channels=8, reduction=2)
    out1 = jax.block_until_ready(scse_block(x1, p1))
    np.testing.assert_allclose(np.asarray(out1), np.asarray(scse_reference(x1, p1)),
                               rtol=1e-5, atol=1e-5)

    # 4) main path with HW padding (10x10 -> 100 lanes padded to 128)
    k4, k5 = jax.random.split(k2)
    x2 = jax.random.normal(k4, (2, 4, 10, 10), jnp.float32)
    p2 = make_params(k5, in_channels=4, reduction=2)
    out2 = jax.block_until_ready(scse_block(x2, p2))
    np.testing.assert_allclose(np.asarray(out2), np.asarray(scse_reference(x2, p2)),
                               rtol=1e-5, atol=1e-5)

    # 5) main path with multiple HW slabs (96x96 -> 9216 lanes -> 9 x 1024 slabs)
    k6, k7 = jax.random.split(k4)
    x3 = jax.random.normal(k6, (2, 4, 96, 96), jnp.float32)
    p3 = make_params(k7, in_channels=4, reduction=2)
    out3 = jax.block_until_ready(scse_block(x3, p3))
    np.testing.assert_allclose(np.asarray(out3), np.asarray(scse_reference(x3, p3)),
                               rtol=1e-5, atol=1e-5)

    print("KERNEL_OK")
</pallas_src>

<mosaic_0001>
module attributes {stable_mosaic.version = 11 : i64} {
  func.func @kernel(%arg0: i32, %arg1: memref<1x4x256xf32, #tpu.memory_space<vmem>>, %arg2: memref<2x4xf32, #tpu.memory_space<vmem>>, %arg3: memref<1x2xf32, #tpu.memory_space<vmem>>, %arg4: memref<4x2xf32, #tpu.memory_space<vmem>>, %arg5: memref<1x4xf32, #tpu.memory_space<vmem>>, %arg6: memref<1x4xf32, #tpu.memory_space<vmem>>, %arg7: memref<1x1xf32, #tpu.memory_space<smem>>, %arg8: memref<1x4x256xf32, #tpu.memory_space<vmem>>) attributes {dimension_semantics = [#tpu.dimension_semantics<parallel>], iteration_bounds = array<i64: 2>, scalar_prefetch = 0 : i64, scratch_operands = 0 : i64, tpu.core_type = #tpu.core_type<tc>, window_params = [{transform_indices = @transform_0, window_bounds = array<i64: 1, 4, 256>}, {pipeline_mode = #tpu.pipeline_mode<synchronous>, transform_indices = @transform_1, window_bounds = array<i64: 2, 4>}, {pipeline_mode = #tpu.pipeline_mode<synchronous>, transform_indices = @transform_2, window_bounds = array<i64: 1, 2>}, {pipeline_mode = #tpu.pipeline_mode<synchronous>, transform_indices = @transform_3, window_bounds = array<i64: 4, 2>}, {pipeline_mode = #tpu.pipeline_mode<synchronous>, transform_indices = @transform_4, window_bounds = array<i64: 1, 4>}, {pipeline_mode = #tpu.pipeline_mode<synchronous>, transform_indices = @transform_5, window_bounds = array<i64: 1, 4>}, {transform_indices = @transform_6, window_bounds = array<i64: 1, 1>}, {transform_indices = @transform_7, window_bounds = array<i64: 1, 4, 256>}]} {
    %cst = arith.constant 0.000000e+00 : f32
    %0 = vector.broadcast %cst : f32 to vector<1x4xf32>
    %c0_i32 = arith.constant 0 : i32
    %c256_i32 = arith.constant 256 : i32
    %1 = arith.muli %c0_i32, %c256_i32 : i32
    %2 = tpu.assume_multiple %1, 256 : i32
    %c0 = arith.constant 0 : index
    %c0_0 = arith.constant 0 : index
    %3 = arith.index_cast %2 : i32 to index
    %4 = vector.load %arg1[%c0, %c0_0, %3] : memref<1x4x256xf32, #tpu.memory_space<vmem>>, vector<1x4x256xf32>
    %cst_1 = arith.constant dense<0.000000e+00> : vector<1x4xf32>
    %5 = vector.multi_reduction <add>, %4, %cst_1 [2] : vector<1x4x256xf32> to vector<1x4xf32>
    %6 = arith.addf %0, %5 : vector<1x4xf32>
    %c1_i32 = arith.constant 1 : i32
    %cst_2 = arith.constant 3.906250e-03 : f32
    %7 = vector.broadcast %cst_2 : f32 to vector<1x4xf32>
    %8 = arith.mulf %6, %7 : vector<1x4xf32>
    %c0_3 = arith.constant 0 : index
    %c0_4 = arith.constant 0 : index
    %9 = vector.load %arg2[%c0_3, %c0_4] : memref<2x4xf32, #tpu.memory_space<vmem>>, vector<2x4xf32>
    %10 = vector.shape_cast %8 : vector<1x4xf32> to vector<1x1x4xf32>
    %11 = vector.shape_cast %9 : vector<2x4xf32> to vector<1x2x4xf32>
    %12 = vector.broadcast %10 : vector<1x1x4xf32> to vector<1x2x4xf32>
    %13 = arith.mulf %12, %11 : vector<1x2x4xf32>
    %cst_5 = arith.constant dense<0.000000e+00> : vector<1x2xf32>
    %14 = vector.multi_reduction <add>, %13, %cst_5 [2] : vector<1x2x4xf32> to vector<1x2xf32>
    %c0_6 = arith.constant 0 : index
    %c0_7 = arith.constant 0 : index
    %15 = vector.load %arg3[%c0_6, %c0_7] : memref<1x2xf32, #tpu.memory_space<vmem>>, vector<1x2xf32>
    %16 = arith.addf %14, %15 : vector<1x2xf32>
    %cst_8 = arith.constant 0.000000e+00 : f32
    %17 = vector.broadcast %cst_8 : f32 to vector<1x2xf32>
    %18 = arith.maximumf %16, %17 : vector<1x2xf32>
    %c0_9 = arith.constant 0 : index
    %c0_10 = arith.constant 0 : index
    %19 = vector.load %arg4[%c0_9, %c0_10] : memref<4x2xf32, #tpu.memory_space<vmem>>, vector<4x2xf32>
    %20 = vector.shape_cast %18 : vector<1x2xf32> to vector<1x1x2xf32>
    %21 = vector.shape_cast %19 : vector<4x2xf32> to vector<1x4x2xf32>
    %22 = vector.broadcast %20 : vector<1x1x2xf32> to vector<1x4x2xf32>
    %23 = arith.mulf %22, %21 : vector<1x4x2xf32>
    %cst_11 = arith.constant dense<0.000000e+00> : vector<1x4xf32>
    %24 = vector.multi_reduction <add>, %23, %cst_11 [2] : vector<1x4x2xf32> to vector<1x4xf32>
    %c0_12 = arith.constant 0 : index
    %c0_13 = arith.constant 0 : index
    %25 = vector.load %arg5[%c0_12, %c0_13] : memref<1x4xf32, #tpu.memory_space<vmem>>, vector<1x4xf32>
    %26 = arith.addf %24, %25 : vector<1x4xf32>
    %27 = arith.negf %26 : vector<1x4xf32>
    %28 = math.exp %27 : vector<1x4xf32>
    %cst_14 = arith.constant 1.000000e+00 : f32
    %29 = vector.broadcast %cst_14 : f32 to vector<1x4xf32>
    %30 = arith.addf %29, %28 : vector<1x4xf32>
    %31 = arith.divf %29, %30 : vector<1x4xf32>
    %c0_15 = arith.constant 0 : index
    %c0_16 = arith.constant 0 : index
    %32 = vector.load %arg6[%c0_15, %c0_16] : memref<1x4xf32, #tpu.memory_space<vmem>>, vector<1x4xf32>
    %33 = vector.shape_cast %32 : vector<1x4xf32> to vector<4xf32>
    %c0_17 = arith.constant 0 : index
    %c0_18 = arith.constant 0 : index
    %34 = memref.load %arg7[%c0_17, %c0_18] : memref<1x1xf32, #tpu.memory_space<smem>>
    %c0_i32_19 = arith.constant 0 : i32
    %c256_i32_20 = arith.constant 256 : i32
    %35 = arith.muli %c0_i32_19, %c256_i32_20 : i32
    %36 = tpu.assume_multiple %35, 256 : i32
    %c0_21 = arith.constant 0 : index
    %c0_22 = arith.constant 0 : index
    %37 = arith.index_cast %36 : i32 to index
    %38 = vector.load %arg1[%c0_21, %c0_22, %37] : memref<1x4x256xf32, #tpu.memory_space<vmem>>, vector<1x4x256xf32>
    %39 = vector.shape_cast %33 : vector<4xf32> to vector<1x4x1xf32>
    %40 = vector.broadcast %39 : vector<1x4x1xf32> to vector<1x4x256xf32>
    %41 = arith.mulf %38, %40 : vector<1x4x256xf32>
    %cst_23 = arith.constant dense<0.000000e+00> : vector<1x256xf32>
    %42 = vector.multi_reduction <add>, %41, %cst_23 [1] : vector<1x4x256xf32> to vector<1x256xf32>
    %43 = vector.broadcast %34 : f32 to vector<1x256xf32>
    %44 = arith.addf %42, %43 : vector<1x256xf32>
    %45 = arith.negf %44 : vector<1x256xf32>
    %46 = math.exp %45 : vector<1x256xf32>
    %cst_24 = arith.constant 1.000000e+00 : f32
    %47 = vector.broadcast %cst_24 : f32 to vector<1x256xf32>
    %48 = arith.addf %47, %46 : vector<1x256xf32>
    %49 = arith.divf %47, %48 : vector<1x256xf32>
    %50 = vector.shape_cast %31 : vector<1x4xf32> to vector<1x4x1xf32>
    %51 = vector.shape_cast %49 : vector<1x256xf32> to vector<1x1x256xf32>
    %52 = vector.broadcast %50 : vector<1x4x1xf32> to vector<1x4x256xf32>
    %53 = vector.broadcast %51 : vector<1x1x256xf32> to vector<1x4x256xf32>
    %54 = arith.addf %52, %53 : vector<1x4x256xf32>
    %55 = arith.mulf %38, %54 : vector<1x4x256xf32>
    %c0_25 = arith.constant 0 : index
    %c0_26 = arith.constant 0 : index
    %56 = arith.index_cast %36 : i32 to index
    %57 = vector.load %arg8[%c0_25, %c0_26, %56] : memref<1x4x256xf32, #tpu.memory_space<vmem>>, vector<1x4x256xf32>
    tpu.vector_store %arg8[%c0_25, %c0_26, %56], %55 {strides = array<i32>} : memref<1x4x256xf32, #tpu.memory_space<vmem>>, vector<1x4x256xf32>,
    %c1_i32_27 = arith.constant 1 : i32
    return
  }
  func.func @transform_0(%arg0: i32) -> (i32, i32, i32) {
    %c0_i32 = arith.constant 0 : i32
    %c0_i32_0 = arith.constant 0 : i32
    %c0_i32_1 = arith.constant 0 : i32
    return %arg0, %c0_i32, %c0_i32_0 : i32, i32, i32
  }
  func.func @transform_1(%arg0: i32) -> (i32, i32) {
    %c0_i32 = arith.constant 0 : i32
    %c0_i32_0 = arith.constant 0 : i32
    %c0_i32_1 = arith.constant 0 : i32
    return %c0_i32, %c0_i32_0 : i32, i32
  }
  func.func @transform_2(%arg0: i32) -> (i32, i32) {
    %c0_i32 = arith.constant 0 : i32
    %c0_i32_0 = arith.constant 0 : i32
    %c0_i32_1 = arith.constant 0 : i32
    return %c0_i32, %c0_i32_0 : i32, i32
  }
  func.func @transform_3(%arg0: i32) -> (i32, i32) {
    %c0_i32 = arith.constant 0 : i32
    %c0_i32_0 = arith.constant 0 : i32
    %c0_i32_1 = arith.constant 0 : i32
    return %c0_i32, %c0_i32_0 : i32, i32
  }
  func.func @transform_4(%arg0: i32) -> (i32, i32) {
    %c0_i32 = arith.constant 0 : i32
    %c0_i32_0 = arith.constant 0 : i32
    %c0_i32_1 = arith.constant 0 : i32
    return %c0_i32, %c0_i32_0 : i32, i32
  }
  func.func @transform_5(%arg0: i32) -> (i32, i32) {
    %c0_i32 = arith.constant 0 : i32
    %c0_i32_0 = arith.constant 0 : i32
    %c0_i32_1 = arith.constant 0 : i32
    return %c0_i32, %c0_i32_0 : i32, i32
  }
  func.func @transform_6(%arg0: i32) -> (i32, i32) {
    %c0_i32 = arith.constant 0 : i32
    %c0_i32_0 = arith.constant 0 : i32
    %c0_i32_1 = arith.constant 0 : i32
    return %c0_i32, %c0_i32_0 : i32, i32
  }
  func.func @transform_7(%arg0: i32) -> (i32, i32, i32) {
    %c0_i32 = arith.constant 0 : i32
    %c0_i32_0 = arith.constant 0 : i32
    %c0_i32_1 = arith.constant 0 : i32
    return %arg0, %c0_i32, %c0_i32_0 : i32, i32, i32
  }
}

</mosaic_0001>

<llo_original>
// kernel: tpu_custom_call.1
$region0: #{tpu_custom_call.1}
  #allocation0 [shape = 'u32[]', space=smem, size = 0x4, offset = 0x4, fixed_abs, tag = 'smem constant byte address 0x4 - core index']
  #allocation1 [shape = 'u32[144,128]{1,0:T(1,128)}', space=vmem, size = 0x12000, scoped, tag = 'internal scratch']
  #allocation2 [shape = 'f32[1,1]{1,0:T(1,128)S(6)}', space=smem, size = 0x200, scoped, tag = 'scoped memory for tpu_custom_call.1']
  %s0 = inlined_call_operand.hbm [shape: f32[2,4,256], index: 0, kind: input, shape index: {}]
  %s1 = inlined_call_operand.vmem [shape: f32[2,4], index: 1, kind: input, shape index: {}]
  %s2 = inlined_call_operand.vmem [shape: f32[1,2], index: 2, kind: input, shape index: {}]
  %s3 = inlined_call_operand.vmem [shape: f32[4,2], index: 3, kind: input, shape index: {}]
  %s4 = inlined_call_operand.vmem [shape: f32[1,4], index: 4, kind: input, shape index: {}]
  %s5 = inlined_call_operand.vmem [shape: f32[1,4], index: 5, kind: input, shape index: {}]
  %s6 = inlined_call_operand.<no memory space> [shape: f32[1,1], index: 6, kind: input, shape index: {}]
  %s7 = inlined_call_operand.hbm [shape: f32[2,4,256], index: 7, kind: output, shape index: {}]
  %s8 = sld [smem:[#allocation0]]
  $region65: #{tpu_custom_call.1} parent=0
    _
  %s10 = ssub.s32 1, %s8
  %s11 = scalar_select 0, %s10, %s8
  %12 = sst [smem:[#allocation2]] %s6
  $region1: #{tpu_custom_call.1} parent=0
    #allocation3 [shape = 'u8[8192]{0}', space=vmem, size = 0x2000, scoped, tag = 'input window, operand 0']
    #allocation4 [shape = 's32[2]{0}', space=sflag, size = 0x8, scoped, tag = 'scoped memory for tpu_custom_call.1']
    #allocation5 [shape = 's32[2]{0}', space=sflag, size = 0x8, scoped, tag = 'scoped memory for tpu_custom_call.1']
    #allocation6 [shape = 'u8[8192]{0}', space=vmem, size = 0x2000, scoped, tag = 'output window, operand 0']
    %13 = vsyncpa [#allocation4], 0
    %s14 = scalar_lea.sflag [#allocation4], 1
    %15 = vsyncpa %s14, 0
    %16 = vsyncpa [#allocation5], 0
    %s17 = scalar_lea.sflag [#allocation5], 1
    %18 = vsyncpa %s17, 0
    loop: start=0, step=1, limit=4
    $region2: #{tpu_custom_call.1} parent=1 // loop_pre_header
      _
    $region3: #{tpu_custom_call.1} parent=1 // loop_header
      %s20 = sphi 0, %s24
      %p21 = scmp.ge.s32.totalorder %s20, 4
      %s30 = sphi 0, %s32
      %s33 = sphi 0, %s30
      %s34 = sphi 0, %s33
      %s50 = sphi 0, %s34
      %s54 = sphi 0, %s54
      %s56 = sphi 0, %s54
      %s57 = sphi 0, %s56
      %s71 = sphi 0, %s57
      %s75 = sphi 0, %s75
      %s77 = sphi 0, %s75
      %s78 = sphi 0, %s77
      %s92 = sphi 0, %s78
      %s96 = sphi 0, %s96
      %s98 = sphi 0, %s96
      %s99 = sphi 0, %s98
      %s113 = sphi 0, %s99
      %s117 = sphi 0, %s117
      %s119 = sphi 0, %s117
      %s120 = sphi 0, %s119
      %s134 = sphi 0, %s120
      %s138 = sphi 0, %s138
      %s140 = sphi 0, %s138
      %s141 = sphi 0, %s140
      %s155 = sphi 0, %s141
      %s159 = sphi 0, %s159
      %s161 = sphi 0, %s159
      %s162 = sphi 0, %s161
      %s176 = sphi 0, %s162
      %s182 = sphi 0, %s184
      %s185 = sphi 0, %s182
      %s186 = sphi 0, %s185
      %s202 = sphi 0, %s186
    $region4: #{tpu_custom_call.1} parent=1 // loop_header_branch
      %23 = sbr.rel (%p21) target = $region8
    $region5: #{tpu_custom_call.1} parent=1 // loop_body
      %s25 = ssub.s32 %s20, 1
      %s26 = ssub.s32 %s20, 2
      %s27 = sadd.s32 %s20, 1
      %s28 = ssub.s32 %s20, %s27
      %p29 = scmp.eq.s32.totalorder %s28, 0
      %s31 = sadd.s32 %s30, 1
      %s32 = scalar_select %p29, %s30, %s31
      %p35 = pneg %p29
      %p36 = scmp.eq.s32.totalorder %s20, 1
      %p37 = por %p35, %p36
      %p38 = scmp.ne.s32.totalorder %s30, %s33
      %p39 = scmp.eq.s32.totalorder %s20, 0
      %p40 = por %p38, %p39
      %p41 = scmp.ne.s32.totalorder %s30, %s33
      %p42 = scmp.eq.s32.totalorder %s25, 1
      %p43 = por %p41, %p42
      %p44 = scmp.ne.s32.totalorder %s33, %s34
      %p45 = scmp.eq.s32.totalorder %s25, 0
      %p46 = por %p44, %p45
      %p47 = scmp.ne.s32.totalorder %s33, %s34
      %p48 = scmp.eq.s32.totalorder %s26, 1
      %p49 = por %p47, %p48
      %p51 = scmp.ne.s32.totalorder %s34, %s50
      %p52 = scmp.eq.s32.totalorder %s26, 0
      %p53 = por %p51, %p52
      %s55 = sadd.s32 %s54, 1
      %p58 = scmp.eq.s32.totalorder %s20, 1
      %p59 = scmp.ne.s32.totalorder %s54, %s56
      %p60 = scmp.eq.s32.totalorder %s20, 0
      %p61 = por %p59, %p60
      %p62 = scmp.ne.s32.totalorder %s54, %s56
      %p63 = scmp.eq.s32.totalorder %s25, 1
      %p64 = por %p62, %p63
      %p65 = scmp.ne.s32.totalorder %s56, %s57
      %p66 = scmp.eq.s32.totalorder %s25, 0
      %p67 = por %p65, %p66
      %p68 = scmp.ne.s32.totalorder %s56, %s57
      %p69 = scmp.eq.s32.totalorder %s26, 1
      %p70 = por %p68, %p69
      %p72 = scmp.ne.s32.totalorder %s57, %s71
      %p73 = scmp.eq.s32.totalorder %s26, 0
      %p74 = por %p72, %p73
      %s76 = sadd.s32 %s75, 1
      %p79 = scmp.eq.s32.totalorder %s20, 1
      %p80 = scmp.ne.s32.totalorder %s75, %s77
      %p81 = scmp.eq.s32.totalorder %s20, 0
      %p82 = por %p80, %p81
      %p83 = scmp.ne.s32.totalorder %s75, %s77
      %p84 = scmp.eq.s32.totalorder %s25, 1
      %p85 = por %p83, %p84
      %p86 = scmp.ne.s32.totalorder %s77, %s78
      %p87 = scmp.eq.s32.totalorder %s25, 0
      %p88 = por %p86, %p87
      %p89 = scmp.ne.s32.totalorder %s77, %s78
      %p90 = scmp.eq.s32.totalorder %s26, 1
      %p91 = por %p89, %p90
      %p93 = scmp.ne.s32.totalorder %s78, %s92
      %p94 = scmp.eq.s32.totalorder %s26, 0
      %p95 = por %p93, %p94
      %s97 = sadd.s32 %s96, 1
      %p100 = scmp.eq.s32.totalorder %s20, 1
      %p101 = scmp.ne.s32.totalorder %s96, %s98
      %p102 = scmp.eq.s32.totalorder %s20, 0
      %p103 = por %p101, %p102
      %p104 = scmp.ne.s32.totalorder %s96, %s98
      %p105 = scmp.eq.s32.totalorder %s25, 1
      %p106 = por %p104, %p105
      %p107 = scmp.ne.s32.totalorder %s98, %s99
      %p108 = scmp.eq.s32.totalorder %s25, 0
      %p109 = por %p107, %p108
      %p110 = scmp.ne.s32.totalorder %s98, %s99
      %p111 = scmp.eq.s32.totalorder %s26, 1
      %p112 = por %p110, %p111
      %p114 = scmp.ne.s32.totalorder %s99, %s113
      %p115 = scmp.eq.s32.totalorder %s26, 0
      %p116 = por %p114, %p115
      %s118 = sadd.s32 %s117, 1
      %p121 = scmp.eq.s32.totalorder %s20, 1
      %p122 = scmp.ne.s32.totalorder %s117, %s119
      %p123 = scmp.eq.s32.totalorder %s20, 0
      %p124 = por %p122, %p123
      %p125 = scmp.ne.s32.totalorder %s117, %s119
      %p126 = scmp.eq.s32.totalorder %s25, 1
      %p127 = por %p125, %p126
      %p128 = scmp.ne.s32.totalorder %s119, %s120
      %p129 = scmp.eq.s32.totalorder %s25, 0
      %p130 = por %p128, %p129
      %p131 = scmp.ne.s32.totalorder %s119, %s120
      %p132 = scmp.eq.s32.totalorder %s26, 1
      %p133 = por %p131, %p132
      %p135 = scmp.ne.s32.totalorder %s120, %s134
      %p136 = scmp.eq.s32.totalorder %s26, 0
      %p137 = por %p135, %p136
      %s139 = sadd.s32 %s138, 1
      %p142 = scmp.eq.s32.totalorder %s20, 1
      %p143 = scmp.ne.s32.totalorder %s138, %s140
      %p144 = scmp.eq.s32.totalorder %s20, 0
      %p145 = por %p143, %p144
      %p146 = scmp.ne.s32.totalorder %s138, %s140
      %p147 = scmp.eq.s32.totalorder %s25, 1
      %p148 = por %p146, %p147
      %p149 = scmp.ne.s32.totalorder %s140, %s141
      %p150 = scmp.eq.s32.totalorder %s25, 0
      %p151 = por %p149, %p150
      %p152 = scmp.ne.s32.totalorder %s140, %s141
      %p153 = scmp.eq.s32.totalorder %s26, 1
      %p154 = por %p152, %p153
      %p156 = scmp.ne.s32.totalorder %s141, %s155
      %p157 = scmp.eq.s32.totalorder %s26, 0
      %p158 = por %p156, %p157
      %s160 = sadd.s32 %s159, 1
      %p163 = scmp.eq.s32.totalorder %s20, 1
      %p164 = scmp.ne.s32.totalorder %s159, %s161
      %p165 = scmp.eq.s32.totalorder %s20, 0
      %p166 = por %p164, %p165
      %p167 = scmp.ne.s32.totalorder %s159, %s161
      %p168 = scmp.eq.s32.totalorder %s25, 1
      %p169 = por %p167, %p168
      %p170 = scmp.ne.s32.totalorder %s161, %s162
      %p171 = scmp.eq.s32.totalorder %s25, 0
      %p172 = por %p170, %p171
      %p173 = scmp.ne.s32.totalorder %s161, %s162
      %p174 = scmp.eq.s32.totalorder %s26, 1
      %p175 = por %p173, %p174
      %p177 = scmp.ne.s32.totalorder %s162, %s176
      %p178 = scmp.eq.s32.totalorder %s26, 0
      %p179 = por %p177, %p178
      %s180 = ssub.s32 %s20, %s27
      %p181 = scmp.eq.s32.totalorder %s180, 0
      %s183 = sadd.s32 %s182, 1
      %s184 = scalar_select %p181, %s182, %s183
      %p187 = pneg %p181
      %p188 = scmp.eq.s32.totalorder %s20, 1
      %p189 = por %p187, %p188
      %p190 = scmp.ne.s32.totalorder %s182, %s185
      %p191 = scmp.eq.s32.totalorder %s20, 0
      %p192 = por %p190, %p191
      %p193 = scmp.ne.s32.totalorder %s182, %s185
      %p194 = scmp.eq.s32.totalorder %s25, 1
      %p195 = por %p193, %p194
      %p196 = scmp.ne.s32.totalorder %s185, %s186
      %p197 = scmp.eq.s32.totalorder %s25, 0
      %p198 = por %p196, %p197
      %p199 = scmp.ne.s32.totalorder %s185, %s186
      %p200 = scmp.eq.s32.totalorder %s26, 1
      %p201 = por %p199, %p200
      %p203 = scmp.ne.s32.totalorder %s186, %s202
      %p204 = scmp.eq.s32.totalorder %s26, 0
      %p205 = por %p203, %p204
      %p206 = scmp.le.s32.totalorder 1, %s20
      %p207 = scmp.lt.s32.totalorder %s20, 3
      %p208 = pnand %p206, %p207
      %p209 = pneg %p208
      // Predicated region
      $region9: #{tpu_custom_call.1} parent=5 // pred_check
        _
      $region10: #{tpu_custom_call.1} parent=5 // pred_check_branch
        %211 = sbr.rel (%p208) target = $region12
      $region11: #{tpu_custom_call.1} parent=5 // pred_region
        %s212 = ssub.s32 %s20, 1
        // Predicated region
        $region13: #{tpu_custom_call.1} parent=11 // pred_check
          %p213 = pneg %p67
        $region14: #{tpu_custom_call.1} parent=11 // pred_check_branch
          %215 = sbr.rel (%p213) target = $region16
        $region15: #{tpu_custom_call.1} parent=11 // pred_region
          _
        $region16: #{tpu_custom_call.1} parent=11 // pred_fallthru
          _
        // Predicated region
        $region17: #{tpu_custom_call.1} parent=11 // pred_check
          %p216 = pneg %p88
        $region18: #{tpu_custom_call.1} parent=11 // pred_check_branch
          %218 = sbr.rel (%p216) target = $region20
        $region19: #{tpu_custom_call.1} parent=11 // pred_region
          _
        $region20: #{tpu_custom_call.1} parent=11 // pred_fallthru
          _
        // Predicated region
        $region21: #{tpu_custom_call.1} parent=11 // pred_check
          %p219 = pneg %p109
        $region22: #{tpu_custom_call.1} parent=11 // pred_check_branch
          %221 = sbr.rel (%p219) target = $region24
        $region23: #{tpu_custom_call.1} parent=11 // pred_region
          _
        $region24: #{tpu_custom_call.1} parent=11 // pred_fallthru
          _
        // Predicated region
        $region25: #{tpu_custom_call.1} parent=11 // pred_check
          %p222 = pneg %p130
        $region26: #{tpu_custom_call.1} parent=11 // pred_check_branch
          %224 = sbr.rel (%p222) target = $region28
        $region27: #{tpu_custom_call.1} parent=11 // pred_region
          _
        $region28: #{tpu_custom_call.1} parent=11 // pred_fallthru
          _
        // Predicated region
        $region29: #{tpu_custom_call.1} parent=11 // pred_check
          %p225 = pneg %p151
        $region30: #{tpu_custom_call.1} parent=11 // pred_check_branch
          %227 = sbr.rel (%p225) target = $region32
        $region31: #{tpu_custom_call.1} parent=11 // pred_region
          _
        $region32: #{tpu_custom_call.1} parent=11 // pred_fallthru
          _
        // Predicated region
        $region33: #{tpu_custom_call.1} parent=11 // pred_check
          %p228 = pneg %p172
        $region34: #{tpu_custom_call.1} parent=11 // pred_check_branch
          %230 = sbr.rel (%p228) target = $region36
        $region35: #{tpu_custom_call.1} parent=11 // pred_region
          _
        $region36: #{tpu_custom_call.1} parent=11 // pred_fallthru
          _
      $region12: #{tpu_custom_call.1} parent=5 // pred_fallthru
        _
      %p231 = scmp.lt.s32.totalorder %s20, 2
      // Predicated region
      $region37: #{tpu_custom_call.1} parent=5 // pred_check
        %p232 = pneg %p231
      $region38: #{tpu_custom_call.1} parent=5 // pred_check_branch
        %234 = sbr.rel (%p232) target = $region40
      $region39: #{tpu_custom_call.1} parent=5 // pred_region
        // Predicated region
        $region41: #{tpu_custom_call.1} parent=39 // pred_check
          %p235 = pneg %p40
        $region42: #{tpu_custom_call.1} parent=39 // pred_check_branch
          %237 = sbr.rel (%p235) target = $region44
        $region43: #{tpu_custom_call.1} parent=39 // pred_region
          %s238 = sand.u32 %s30, 1
          %s239 = scalar_lea.sflag [#allocation4], %s238
          %s240 = sand.u32 %s30, 1
          %s241 = smul.addr %s240, 8
          %s242 = scalar_lea.vmem [#allocation3], %s241
          %s244 = ssub.s32 128, 128
          %245 = vsyncadd %s239, %s244
          %s246 = smul.addr %s20, 2
          %s247 = smul.addr %s246, 64
          %s248 = scalar_lea.hbm %s0, %s247
          %s250 = sshll.u32 %s242, 4
          %s251 = int_to_ptr.vmem [resolvable:$true] %s250
          %253 = dma.hbm_to_vmem [thread:$0]  %s248, 128, %s251, %s239
        $region44: #{tpu_custom_call.1} parent=39 // pred_fallthru
          _
      $region40: #{tpu_custom_call.1} parent=5 // pred_fallthru
        _
      %p254 = scmp.le.s32.totalorder 1, %s20
      %p255 = scmp.lt.s32.totalorder %s20, 3
      %p256 = pnand %p254, %p255
      %p257 = pneg %p256
      // Predicated region
      $region45: #{tpu_custom_call.1} parent=5 // pred_check
        _
      $region46: #{tpu_custom_call.1} parent=5 // pred_check_branch
        %259 = sbr.rel (%p256) target = $region48
      $region47: #{tpu_custom_call.1} parent=5 // pred_region
        %s260 = ssub.s32 %s20, 1
        %s261 = sand.u32 %s33, 1
        %s262 = scalar_lea.sflag [#allocation4], %s261
        %s263 = sand.u32 %s33, 1
        %s264 = smul.addr %s263, 8
        %s265 = scalar_lea.vmem [#allocation3], %s264
        // Predicated region
        $region49: #{tpu_custom_call.1} parent=47 // pred_check
          %p266 = pneg %p46
        $region50: #{tpu_custom_call.1} parent=47 // pred_check_branch
          %268 = sbr.rel (%p266) target = $region52
        $region51: #{tpu_custom_call.1} parent=47 // pred_region
          %269 = dma.done %s262, 128
        $region52: #{tpu_custom_call.1} parent=47 // pred_fallthru
          _
        %s270 = sand.u32 %s33, 1
        %s271 = scalar_lea.sflag [#allocation4], %s270
        %s272 = sand.u32 %s33, 1
        %s273 = smul.addr %s272, 8
        %s274 = scalar_lea.vmem [#allocation3], %s273
        %p275 = pneg %p46
        %p276 = pneg %p43
        %p277 = pneg %p67
        %p278 = pneg %p64
        %p279 = pneg %p88
        %p280 = pneg %p85
        %p281 = pneg %p109
        %p282 = pneg %p106
        %p283 = pneg %p130
        %p284 = pneg %p127
        %p285 = pneg %p151
        %p286 = pneg %p148
        %p287 = pneg %p172
        %p288 = pneg %p169
        %p289 = pneg %p198
        %p290 = pneg %p195
        %s291 = sand.u32 %s185, 1
        %s292 = scalar_lea.sflag [#allocation5], %s291
        %s293 = sand.u32 %s185, 1
        %s294 = smul.addr %s293, 8
        %s295 = scalar_lea.vmem [#allocation6], %s294
        %v296 = vld [vmem:[%s265] sm:$0xff]
        %v298 = vcombine.high %v296, %v296
        %vm300 = vcmask 1043456
        %v301 = vsel %vm300, %v296, 0.0
        %v302 = vsel %vm300, %v298, 0.0
        %v303 = vadd.f32 %v301, %v302
        %304 = vadd.xlane.f32.xlu0 %v303
        %v305 = vpop.xlane.xlu0 %304
        %v306 = vadd.f32 %v305, 0.0
        %v307 = vmul.f32 %v306, 0.00390625
        %v308 = vld [vmem:[%s1] sm:$0x3]
        %v310 = vlaneseq
        %v311 = vshrl.u32 %v310, 7
        %v312 = vsub.s32 0, %v311
        %v313 = vrot.slane %v308, %v312
        %315 = vbcast.lane.b32.xlu0 %v313, 256
        %v316 = vpop.permute.xlu0 %315
        %v317 = vlaneseq
        %v318 = vshrl.u32 %v317, 7
        %v319 = vsub.s32 1, %v318
        %v320 = vrot.slane %v308, %v319
        %322 = vbcast.lane.b32.xlu0 %v320, 256
        %v323 = vpop.permute.xlu0 %322
        %v326 = vmul.f32 %v307, %v316
        %v327 = vmul.f32 %v307, %v323
        %330 = vset.pattern.permute.xlu0 0
        %331 = vperm.xlu0 %330, %v326
        %v332 = vpop.permute.xlu0 %331
        %333 = vset.pattern.permute.xlu0 0
        %334 = vperm.xlu0 %333, %v327
        %v335 = vpop.permute.xlu0 %334
        %v336 = vlaneseq
        %v337 = vand.u32 %v336, 127
        %v338 = vlaneseq
        %v339 = vshrl.u32 %v338, 7
        %v340 = vsub.s32 %v337, %v339
        %v341 = vrot.slane %v332, %v340
        %v342 = vlaneseq
        %v343 = vshrl.u32 %v342, 7
        %v344 = vsub.s32 %v337, %v343
        %v345 = vrot.slane %v335, %v344
        %vm346 = vcmask 1041409
        %v347 = vsel %vm346, %v345, %v341
        %vm349 = vcmask 25600
        %v350 = vsel %vm349, %v347, 0.0
        %351 = vadd.xlane.f32.xlu0 %v350
        %v352 = vpop.xlane.xlu0 %351
        %v353 = vld [vmem:[%s2] sm:$0x1]
        %v355 = vlaneseq
        %v356 = vshrl.u32 %v355, 7
        %v357 = vsub.s32 0, %v356
        %v358 = vrot.slane %v353, %v357
        %360 = vbcast.lane.b32.xlu0 %v358, 256
        %v361 = vpop.permute.xlu0 %360
        %v363 = vadd.f32 %v352, %v361
        %v364 = vmax.f32 %v363, 0.0
        %v365 = vld [vmem:[%s3] sm:$0xf]
        %v367 = vlaneseq
        %v368 = vshrl.u32 %v367, 7
        %v369 = vsub.s32 0, %v368
        %v370 = vrot.slane %v365, %v369
        %372 = vbcast.lane.b32.xlu0 %v370, 256
        %v373 = vpop.permute.xlu0 %372
        %v374 = vlaneseq
        %v375 = vshrl.u32 %v374, 7
        %v376 = vsub.s32 1, %v375
        %v377 = vrot.slane %v365, %v376
        %379 = vbcast.lane.b32.xlu0 %v377, 256
        %v380 = vpop.permute.xlu0 %379
        %v381 = vlaneseq
        %v382 = vshrl.u32 %v381, 7
        %v383 = vsub.s32 2, %v382
        %v384 = vrot.slane %v365, %v383
        %386 = vbcast.lane.b32.xlu0 %v384, 256
        %v387 = vpop.permute.xlu0 %386
        %v388 = vlaneseq
        %v389 = vshrl.u32 %v388, 7
        %v390 = vsub.s32 3, %v389
        %v391 = vrot.slane %v365, %v390
        %393 = vbcast.lane.b32.xlu0 %v391, 256
        %v394 = vpop.permute.xlu0 %393
        %v399 = vmul.f32 %v364, %v373
        %v400 = vmul.f32 %v364, %v380
        %v401 = vmul.f32 %v364, %v387
        %v402 = vmul.f32 %v364, %v394
        %407 = vset.pattern.permute.xlu0 0
        %408 = vperm.xlu0 %407, %v399
        %v409 = vpop.permute.xlu0 %408
        %410 = vset.pattern.permute.xlu0 0
        %411 = vperm.xlu0 %410, %v400
        %v412 = vpop.permute.xlu0 %411
        %413 = vset.pattern.permute.xlu0 0
        %414 = vperm.xlu0 %413, %v401
        %v415 = vpop.permute.xlu0 %414
        %416 = vset.pattern.permute.xlu0 0
        %417 = vperm.xlu0 %416, %v402
        %v418 = vpop.permute.xlu0 %417
        %v419 = vlaneseq
        %v420 = vshrl.u32 %v419, 7
        %v421 = vsub.s32 %v337, %v420
        %v422 = vrot.slane %v409, %v421
        %v423 = vlaneseq
        %v424 = vshrl.u32 %v423, 7
        %v425 = vsub.s32 %v337, %v424
        %v426 = vrot.slane %v412, %v425
        %v427 = vlaneseq
        %v428 = vshrl.u32 %v427, 7
        %v429 = vsub.s32 %v337, %v428
        %v430 = vrot.slane %v415, %v429
        %v431 = vlaneseq
        %v432 = vshrl.u32 %v431, 7
        %v433 = vsub.s32 %v337, %v432
        %v434 = vrot.slane %v418, %v433
        %v435 = vsel %vm346, %v426, %v422
        %vm436 = vcmask 1042434
        %v437 = vsel %vm436, %v430, %v435
        %vm438 = vcmask 1043459
        %v439 = vsel %vm438, %v434, %v437
        %vm441 = vcmask 11264
        %v442 = vsel %vm441, %v439, 0.0
        %443 = vadd.xlane.f32.xlu0 %v442
        %v444 = vpop.xlane.xlu0 %443
        %v445 = vld [vmem:[%s4] sm:$0x1]
        %v447 = vlaneseq
        %v448 = vshrl.u32 %v447, 7
        %v449 = vsub.s32 0, %v448
        %v450 = vrot.slane %v445, %v449
        %452 = vbcast.lane.b32.xlu0 %v450, 256
        %v453 = vpop.permute.xlu0 %452
        %v455 = vadd.f32 %v444, %v453
        %v456 = vxor.u32 %v455, 2147483648
        %v457 = vmul.f32 %v456, 1.442695
        %v458 = vpow.pop %v457
        %v459 = vadd.f32 %v458, 1.0
        %v460 = vrcp.pop %v459
        %v461 = vmul.f32 1.0, %v460
        %v462 = vld [vmem:[%s5] sm:$0x1]
        %s463 = sld [smem:[#allocation2]]
        %v464 = vlaneseq
        %v465 = vshrl.u32 %v464, 7
        %v466 = vsub.s32 0, %v465
        %v467 = vrot.slane %v462, %v466
        %469 = vbcast.lane.b32.xlu0 %v467, 256
        %v470 = vpop.permute.xlu0 %469
        %v473 = vunpack.c.l.s4 839922192
        %v474 = vunpack.c.0.s8 %v473
        %v475 = vlaneseq
        %v476 = vshrl.u32 %v475, 7
        %v477 = vsub.s32 %v474, %v476
        %v478 = vrot.slane %v470, %v477
        %v480 = vmul.f32 %v296, %v478
        %v482 = vcombine.high %v480, %v480
        %v484 = vsel %vm300, %v480, 0.0
        %v485 = vrot.slane %v484, 4
        %v486 = vadd.f32 %v484, %v485
        %v487 = vrot.slane %v486, 2
        %v488 = vadd.f32 %v486, %v487
        %v489 = vrot.slane %v488, 1
        %v490 = vadd.f32 %v488, %v489
        %v491 = vsel %vm300, %v482, 0.0
        %v492 = vrot.slane %v491, 4
        %v493 = vadd.f32 %v491, %v492
        %v494 = vrot.slane %v493, 2
        %v495 = vadd.f32 %v493, %v494
        %v496 = vrot.slane %v495, 1
        %v497 = vadd.f32 %v495, %v496
        %v498 = vstv %s463
        %v499 = vadd.f32 %v490, %v498
        %v500 = vadd.f32 %v497, %v498
        %v501 = vxor.u32 %v499, 2147483648
        %v502 = vxor.u32 %v500, 2147483648
        %v503 = vmul.f32 %v501, 1.442695
        %v504 = vpow.pop %v503
        %v505 = vmul.f32 %v502, 1.442695
        %v506 = vpow.pop %v505
        %v507 = vadd.f32 %v504, 1.0
        %v508 = vadd.f32 %v506, 1.0
        %v509 = vrcp.pop %v507
        %v510 = vmul.f32 1.0, %v509
        %v511 = vrcp.pop %v508
        %v512 = vmul.f32 1.0, %v511
        %514 = vset.pattern.permute.xlu0 0
        %515 = vperm.xlu0 %514, %v461
        %v516 = vpop.permute.xlu0 %515
        %v518 = vadd.f32 %v516, %v510
        %v519 = vadd.f32 %v516, %v512
        %v522 = vcombine.low %v518, %v519
        %v524 = vmul.f32 %v296, %v522
        %525 = vst [vmem:[%s295] sm:$0xff] %v524
        %s526 = sand.u32 %s185, 1
        %s527 = scalar_lea.sflag [#allocation5], %s526
        %s528 = sand.u32 %s185, 1
        %s529 = smul.addr %s528, 8
        %s530 = scalar_lea.vmem [#allocation6], %s529
        // Predicated region
        $region53: #{tpu_custom_call.1} parent=47 // pred_check
          %p531 = pneg %p195
        $region54: #{tpu_custom_call.1} parent=47 // pred_check_branch
          %533 = sbr.rel (%p531) target = $region56
        $region55: #{tpu_custom_call.1} parent=47 // pred_region
          %s535 = ssub.s32 128, 128
          %536 = vsyncadd %s527, %s535
          %s537 = smul.addr %s25, 2
          %s538 = smul.addr %s537, 64
          %s539 = scalar_lea.hbm %s7, %s538
          %s541 = sshll.u32 %s530, 4
          %s542 = int_to_ptr.vmem [resolvable:$true] %s541
          %544 = dma.vmem_to_hbm [thread:$0]  %s542, 128, %s539, %s527
        $region56: #{tpu_custom_call.1} parent=47 // pred_fallthru
          _
      $region48: #{tpu_custom_call.1} parent=5 // pred_fallthru
        _
      %p545 = scmp.le.s32.totalorder 2, %s20
      // Predicated region
      $region57: #{tpu_custom_call.1} parent=5 // pred_check
        %p546 = pneg %p545
      $region58: #{tpu_custom_call.1} parent=5 // pred_check_branch
        %548 = sbr.rel (%p546) target = $region60
      $region59: #{tpu_custom_call.1} parent=5 // pred_region
        %s549 = ssub.s32 %s20, 2
        // Predicated region
        $region61: #{tpu_custom_call.1} parent=59 // pred_check
          %p550 = pneg %p201
        $region62: #{tpu_custom_call.1} parent=59 // pred_check_branch
          %552 = sbr.rel (%p550) target = $region64
        $region63: #{tpu_custom_call.1} parent=59 // pred_region
          %s553 = sand.u32 %s186, 1
          %s554 = scalar_lea.sflag [#allocation5], %s553
          %s555 = sand.u32 %s186, 1
          %s556 = smul.addr %s555, 8
          %s557 = scalar_lea.vmem [#allocation6], %s556
          %558 = dma.done %s554, 128
        $region64: #{tpu_custom_call.1} parent=59 // pred_fallthru
          _
      $region60: #{tpu_custom_call.1} parent=5 // pred_fallthru
        _
    $region6: #{tpu_custom_call.1} parent=1 // loop_footer
      %s24 = sadd.s32 1, %s20
    $region7: #{tpu_custom_call.1} parent=1 // loop_footer_branch
      %19 = sbr.rel target = $region3
    $region8: #{tpu_custom_call.1} parent=1 // loop_exit
      _
    %559 = vsyncpa [#allocation4], 1
    %s560 = scalar_lea.sflag [#allocation4], 1
    %561 = vsyncpa %s560, 1
    %562 = vsyncpa [#allocation5], 1
    %s563 = scalar_lea.sflag [#allocation5], 1
    %564 = vsyncpa %s563, 1

</llo_original>
